<compile_context>
chip_gen: v5e
topology: v5e:2x2
jax: 0.10.0
libtpu: 0.0.40
codegen_flags: <defaults>
</compile_context>

<pallas_src>
import functools

import jax
import jax.numpy as jnp
from jax import lax
from jax.experimental import pallas as pl
from jax.experimental.pallas import tpu as pltpu


def _round_up(v, m):
    return ((v + m - 1) // m) * m


def _tensorcores_per_chip():
    """Best-effort TensorCore count per chip (v7x/v4 expose 2)."""
    try:
        kind = jax.devices()[0].device_kind.lower()
    except Exception:
        return 1
    if "v7" in kind or "v4" in kind or "v3" in kind or "v5p" in kind:
        return 2
    return 1


def _choose_queue_tile(sq, tn, dp, budget_bytes):
    """Largest queue tile (multiple of 128, divides Sq) within the VMEM budget.

    Accounts for the double-buffered bf16 queue stream, the small idx stream,
    and the (TN, ts) f32/i32 per-tile temporaries (sim / col / cand / mask).
    """
    per_col = 4 * dp + 64 + 16 * tn
    fixed = (2 * tn * dp * 4          # x row tile, double-buffered f32
             + tn * dp * 2            # normalized-x bf16 scratch
             + 8 * tn * 128 * 4)      # idx blocks + (TN,1) outputs/scratch (lane-padded)
    ts_max = max(128, (budget_bytes - fixed) // per_col)
    for cand in (2048, 1536, 1024, 768, 512, 384, 256, 128):
        if cand <= ts_max and cand <= sq and sq % cand == 0:
            return cand
    return 128


# ----------------------------------------------------------------------------
# Pallas kernel: online top-1 nearest-neighbor argmax over a tiled bf16 queue
# ----------------------------------------------------------------------------
def _nnclr_nn_kernel(x_ref, qxn_ref, idx_ref, qidx_ref,     # inputs
                     nnqidx_ref,                            # output (resident)
                     xn_sc, max_sc,                         # VMEM scratch
                     *, training, num_valid_cols):
    s = pl.program_id(1)                  # queue-tile index (reduction axis)
    tn = x_ref.shape[0]                   # embedding rows per tile
    ts = qxn_ref.shape[0]                 # queue rows per tile

    # ---- init: normalize x once per row tile (bf16 cache), reset state -----
    @pl.when(s == 0)
    def _init():
        x = x_ref[...].astype(jnp.float32)
        inv = lax.rsqrt(jnp.maximum(jnp.sum(x * x, axis=-1, keepdims=True),
                                    jnp.float32(1e-24)))
        xn_sc[...] = (x * inv).astype(jnp.bfloat16)
        max_sc[...] = jnp.full_like(max_sc, jnp.float32(-4.0))
        nnqidx_ref[...] = jnp.zeros_like(nnqidx_ref)

    # ---- similarity tile: bf16 x bf16 on the MXU, f32 accumulation ---------
    sim = lax.dot_general(xn_sc[...], qxn_ref[...],
                          (((1,), (1,)), ((), ())),
                          preferred_element_type=jnp.float32)     # (TN, TS)

    col = lax.broadcasted_iota(jnp.int32, (tn, ts), 1) + s * ts   # global slot ids

    # ---- single fused mask: same-sample slots and/or padded columns --------
    # -2.0 is below any genuine cosine similarity.  (Pathological edge case:
    # if EVERY valid slot is same-sample-masked a padded slot could win; the
    # wrapper clamps nn_qidx, and the reference picks an arbitrary masked slot
    # in that situation anyway.)
    bad = None
    if training:
        bad = idx_ref[...] == qidx_ref[...]                       # (TN,1)==(1,TS)
    if num_valid_cols is not None:
        pad = col >= num_valid_cols
        bad = pad if bad is None else (bad | pad)
    if bad is not None:
        sim = jnp.where(bad, jnp.float32(-2.0), sim)

    # ---- tile-local top-1 (first-occurrence tie-break) ----------------------
    tile_max = jnp.max(sim, axis=-1, keepdims=True)               # (TN, 1)
    cand = jnp.where(sim == tile_max, col, jnp.int32(2147483647))
    tile_arg = jnp.min(cand, axis=-1, keepdims=True)              # (TN, 1)

    # ---- online running top-1 (strict '>' keeps earliest index) ------------
    improve = tile_max > max_sc[...]
    max_sc[...] = jnp.where(improve, tile_max, max_sc[...])
    nnqidx_ref[...] = jnp.where(improve, tile_arg, nnqidx_ref[...])


def nnclr_nn_argmax(x, queue_xn, idx_rep, queue_idx, *, num_valid, training=True):
    """Streaming argmax of cosine similarity.

    x:         (N, D)  f32 raw embeddings
    queue_xn:  (Sq, Dp) bf16 pre-normalized, pre-padded queue (Sq%128==0, Dp%128==0)
    idx_rep:   (N,)    sample id per embedding row
    queue_idx: (Sq,)   sample id per queue slot (padding slots use -2)
    num_valid: number of real queue slots (<= Sq)
    Returns nn_qidx (N,) int32.
    """
    N, D = x.shape
    Sq, Dp = queue_xn.shape
    assert Dp % 128 == 0 and Sq % 128 == 0 and D <= Dp

    # ---- row tiling: feed both TensorCores on 2-TC chips, big tiles else ----
    cores = _tensorcores_per_chip()
    N8 = _round_up(N, 8)
    if cores >= 2 and 16 <= N8 <= 512:
        TN = _round_up(-(-N8 // 2), 8)          # exactly 2 row tiles
    else:
        TN = min(N8, 256)                       # <=256-row tiles (high AI)
    Np = _round_up(N8, TN)

    # ---- queue (reduction-axis) tile from an explicit VMEM budget ----------
    ts = _choose_queue_tile(Sq, TN, Dp, budget_bytes=20 * 1024 * 1024)

    # wrapper-side padding of x only (no-op for production shapes)
    xp = x
    if (Np, Dp) != (N, D):
        xp = jnp.pad(x, ((0, Np - N), (0, Dp - D)))
    idx2 = idx_rep.reshape(N, 1).astype(jnp.int32)
    if Np != N:
        idx2 = jnp.pad(idx2, ((0, Np - N), (0, 0)), constant_values=-3)
    qidx2 = queue_idx.reshape(1, Sq).astype(jnp.int32)

    kernel = functools.partial(
        _nnclr_nn_kernel, training=training,
        num_valid_cols=(None if int(num_valid) == Sq else int(num_valid)))

    nn_qidx = pl.pallas_call(
        kernel,
        out_shape=jax.ShapeDtypeStruct((Np, 1), jnp.int32),
        grid_spec=pltpu.PrefetchScalarGridSpec(
            num_scalar_prefetch=0,
            grid=(Np // TN, Sq // ts),
            in_specs=[
                pl.BlockSpec((TN, Dp), lambda n, s: (n, 0)),   # x rows (resident)
                pl.BlockSpec((ts, Dp), lambda n, s: (s, 0)),   # bf16 normalized queue stream
                pl.BlockSpec((TN, 1), lambda n, s: (n, 0)),    # sample id per x row
                pl.BlockSpec((1, ts), lambda n, s: (0, s)),    # sample id per queue slot
            ],
            out_specs=pl.BlockSpec((TN, 1), lambda n, s: (n, 0)),
            scratch_shapes=[
                pltpu.VMEM((TN, Dp), jnp.bfloat16),   # normalized x rows (bf16 cache)
                pltpu.VMEM((TN, 1), jnp.float32),     # running max similarity
            ]),
        compiler_params=pltpu.CompilerParams(
            dimension_semantics=("parallel", "arbitrary"),
            vmem_limit_bytes=32 * 1024 * 1024),
    )(xp, queue_xn, idx2, qidx2)

    return nn_qidx[:N, 0]


# ----------------------------------------------------------------------------
# NnclrQueue: state init + forward wrapper (queue FIFO glue in plain JAX)
# ----------------------------------------------------------------------------
def init_nnclr_queue_state(key, size, dim):
    """State holds the raw queue plus a pre-normalized, pre-padded bf16 copy."""
    Dp = _round_up(dim, 128)
    Sq = _round_up(size, 512)
    qx = jax.random.normal(key, (size, dim), dtype=jnp.float32)
    inv = lax.rsqrt(jnp.maximum(jnp.sum(qx * qx, -1, keepdims=True),
                                jnp.float32(1e-24)))
    xn = jnp.zeros((Sq, Dp), jnp.bfloat16).at[:size, :dim].set(
        (qx * inv).astype(jnp.bfloat16))
    qidx = jnp.full((Sq,), -2, jnp.int32).at[:size].set(-1)
    return {
        "x": qx,                                    # raw queue (for nn_x gather)
        "xn": xn,                                   # normalized bf16 queue (kernel stream)
        "idx": qidx,                                # sample ids (padded with -2)
        "cls": -jnp.ones((size,), jnp.int32),
        "age": jnp.zeros((size,), jnp.int32),
        "ptr": jnp.zeros((), jnp.int32),            # traced scalar (no recompiles)
    }


@functools.partial(jax.jit, static_argnames=("training", "reduction"),
                   donate_argnums=(0,))
def nnclr_queue_forward(state, x, idx, cls=None, *, training=True,
                        reduction="mean"):
    """Mirrors NnclrQueue.forward with guidance='none', random_swap_p=0, topk=1."""
    assert x.ndim == 2
    size = state["cls"].shape[0]
    D = x.shape[1]
    batch_size = idx.shape[0]
    num_views = x.shape[0] // batch_size
    # FIFO scatter below assumes at most one wrap (distinct positions).
    assert batch_size <= size

    # sample-id per embedding row: idx repeated num_views times (torch .repeat)
    idx_rep = jnp.tile(idx.astype(jnp.int32), (num_views,))

    # ---- Pallas hot path: argmax only ---------------------------------------
    nn_qidx = nnclr_nn_argmax(x, state["xn"], idx_rep, state["idx"],
                              num_valid=size, training=training)
    nn_qidx = jnp.minimum(nn_qidx, jnp.int32(size - 1))   # safety clamp

    # ---- nn_x gather + exact f32 cosine metric (N rows, negligible) ---------
    nn_x = state["x"][nn_qidx]                              # (N, D) raw rows
    x_norm = jnp.maximum(jnp.sqrt(jnp.sum(x * x, -1)), jnp.float32(1e-8))
    nn_norm = jnp.maximum(jnp.sqrt(jnp.sum(nn_x * nn_x, -1)), jnp.float32(1e-8))
    nn_sim = jnp.sum(x * nn_x, -1) / (x_norm * nn_norm)

    # ---- metrics (computed from the pre-update queue state) -----------------
    def _reduce(v):
        if reduction == "mean":
            return jnp.mean(v.astype(jnp.float32))
        return v

    metrics = {
        "nn-similarity": _reduce(nn_sim),
        "nn-age": _reduce(state["age"][nn_qidx]),
    }
    if cls is not None:
        metrics["nn-accuracy"] = _reduce(
            jnp.tile(cls.astype(jnp.int32), (num_views,)) == state["cls"][nn_qidx])

    # ---- queue FIFO update (training only; single device -> all_gather=id) --
    new_state = dict(state)
    if training:
        x_view0 = x[:batch_size]
        inv = lax.rsqrt(jnp.maximum(jnp.sum(x_view0 * x_view0, -1, keepdims=True),
                                    jnp.float32(1e-24)))
        xn_rows = jnp.zeros((batch_size, state["xn"].shape[1]), jnp.bfloat16)
        xn_rows = xn_rows.at[:, :D].set((x_view0 * inv).astype(jnp.bfloat16))

        ptr = state["ptr"]
        pos = (ptr + jnp.arange(batch_size, dtype=jnp.int32)) % size
        new_state.update(
            x=state["x"].at[pos].set(x_view0.astype(state["x"].dtype)),
            xn=state["xn"].at[pos].set(xn_rows),        # incremental normalized update
            idx=state["idx"].at[pos].set(idx.astype(jnp.int32)),
            age=state["age"].at[pos].set(0) + jnp.int32(batch_size),
            ptr=((ptr + batch_size) % size).astype(jnp.int32))
        if cls is not None:
            new_state["cls"] = state["cls"].at[pos].set(cls.astype(jnp.int32))

    return nn_x, metrics, new_state


# ----------------------------------------------------------------------------
if __name__ == "__main__":
    key = jax.random.PRNGKey(0)
    k_queue, k_x = jax.random.split(key)

    # small shapes consistent with the module: queue size=128, dim=32,
    # batch=4 samples x 2 views -> 8 embedding rows.
    size, dim = 128, 32
    batch, num_views = 4, 2

    state = init_nnclr_queue_state(k_queue, size, dim)
    x = jax.random.normal(k_x, (batch * num_views, dim), dtype=jnp.float32)
    idx = jnp.arange(batch, dtype=jnp.int32)
    cls = jnp.array([0, 1, 2, 3], dtype=jnp.int32)

    nn_x, metrics, new_state = nnclr_queue_forward(
        state, x, idx, cls=cls, training=True, reduction="mean")

    jax.block_until_ready(nn_x)
    jax.block_until_ready(metrics["nn-similarity"])
    jax.block_until_ready(new_state["x"])

    assert nn_x.shape == (batch * num_views, dim)
    assert new_state["x"].shape == (size, dim)
    assert new_state["xn"].shape[1] % 128 == 0
    print("KERNEL_OK")
</pallas_src>

<mosaic_0001>
module attributes {stable_mosaic.version = 11 : i64} {
  func.func @_nnclr_nn_kernel(%arg0: i32, %arg1: i32, %arg2: memref<8x128xf32, #tpu.memory_space<vmem>>, %arg3: memref<512x128xbf16, #tpu.memory_space<vmem>>, %arg4: memref<8x1xi32, #tpu.memory_space<vmem>>, %arg5: memref<1x512xi32, #tpu.memory_space<vmem>>, %arg6: memref<8x1xi32, #tpu.memory_space<vmem>>, %arg7: memref<8x128xbf16, #tpu.memory_space<vmem>>, %arg8: memref<8x1xf32, #tpu.memory_space<vmem>>) attributes {dimension_semantics = [#tpu.dimension_semantics<parallel>, #tpu.dimension_semantics<arbitrary>], iteration_bounds = array<i64: 1, 1>, scalar_prefetch = 0 : i64, scratch_operands = 2 : i64, tpu.core_type = #tpu.core_type<tc>, window_params = [{transform_indices = @transform_0, window_bounds = array<i64: 8, 128>}, {transform_indices = @transform_1, window_bounds = array<i64: 512, 128>}, {transform_indices = @transform_2, window_bounds = array<i64: 8, 1>}, {transform_indices = @transform_3, window_bounds = array<i64: 1, 512>}, {transform_indices = @transform_4, window_bounds = array<i64: 8, 1>}]} {
    %c0_i32 = arith.constant 0 : i32
    %0 = arith.cmpi eq, %arg1, %c0_i32 : i32
    %1 = arith.extui %0 : i1 to i32
    %c0_i32_0 = arith.constant 0 : i32
    %2 = arith.cmpi ne, %1, %c0_i32_0 : i32
    scf.if %2 {
      %c0_21 = arith.constant 0 : index
      %c0_22 = arith.constant 0 : index
      %36 = vector.load %arg2[%c0_21, %c0_22] : memref<8x128xf32, #tpu.memory_space<vmem>>, vector<8x128xf32>
      %37 = arith.mulf %36, %36 : vector<8x128xf32>
      %cst_23 = arith.constant dense<0.000000e+00> : vector<8xf32>
      %38 = vector.multi_reduction <add>, %37, %cst_23 [1] : vector<8x128xf32> to vector<8xf32>
      %39 = vector.shape_cast %38 : vector<8xf32> to vector<8x1xf32>
      %cst_24 = arith.constant 1.000000e-24 : f32
      %40 = vector.broadcast %cst_24 : f32 to vector<8x1xf32>
      %41 = arith.maximumf %39, %40 : vector<8x1xf32>
      %42 = math.rsqrt %41 : vector<8x1xf32>
      %43 = vector.broadcast %42 : vector<8x1xf32> to vector<8x128xf32>
      %44 = arith.mulf %36, %43 : vector<8x128xf32>
      %45 = arith.truncf %44 : vector<8x128xf32> to vector<8x128xbf16>
      %c0_25 = arith.constant 0 : index
      %c0_26 = arith.constant 0 : index
      %46 = vector.load %arg7[%c0_25, %c0_26] : memref<8x128xbf16, #tpu.memory_space<vmem>>, vector<8x128xbf16>
      tpu.vector_store %arg7[%c0_25, %c0_26], %45 {strides = array<i32>} : memref<8x128xbf16, #tpu.memory_space<vmem>>, vector<8x128xbf16>,
      %cst_27 = arith.constant -4.000000e+00 : f32
      %47 = vector.broadcast %cst_27 : f32 to vector<8x1xf32>
      %c0_28 = arith.constant 0 : index
      %c0_29 = arith.constant 0 : index
      %48 = vector.load %arg8[%c0_28, %c0_29] : memref<8x1xf32, #tpu.memory_space<vmem>>, vector<8x1xf32>
      tpu.vector_store %arg8[%c0_28, %c0_29], %47 {strides = array<i32>} : memref<8x1xf32, #tpu.memory_space<vmem>>, vector<8x1xf32>,
      %c0_i32_30 = arith.constant 0 : i32
      %49 = vector.broadcast %c0_i32_30 : i32 to vector<8x1xi32>
      %c0_31 = arith.constant 0 : index
      %c0_32 = arith.constant 0 : index
      %50 = vector.load %arg6[%c0_31, %c0_32] : memref<8x1xi32, #tpu.memory_space<vmem>>, vector<8x1xi32>
      tpu.vector_store %arg6[%c0_31, %c0_32], %49 {strides = array<i32>} : memref<8x1xi32, #tpu.memory_space<vmem>>, vector<8x1xi32>,
    } else {
    }
    %c0 = arith.constant 0 : index
    %c0_1 = arith.constant 0 : index
    %3 = vector.load %arg7[%c0, %c0_1] : memref<8x128xbf16, #tpu.memory_space<vmem>>, vector<8x128xbf16>
    %c0_2 = arith.constant 0 : index
    %c0_3 = arith.constant 0 : index
    %4 = vector.load %arg3[%c0_2, %c0_3] : memref<512x128xbf16, #tpu.memory_space<vmem>>, vector<512x128xbf16>
    %cst = arith.constant dense<0.000000e+00> : vector<8x512xf32>
    %5 = tpu.matmul %3, %4, %cst {dimension_numbers = #tpu.dot_dimension_numbers<[1], [1], [0], [0], [0, 0, 1, 0], [], []>} : vector<8x128xbf16>, vector<512x128xbf16>, vector<8x512xf32> -> vector<8x512xf32>
    %6 = tpu.iota {dimensions = array<i32: 1>} : vector<8x512xi32>
    %c512_i32 = arith.constant 512 : i32
    %7 = arith.muli %arg1, %c512_i32 : i32
    %8 = vector.broadcast %7 : i32 to vector<8x512xi32>
    %9 = arith.addi %6, %8 : vector<8x512xi32>
    %c0_4 = arith.constant 0 : index
    %c0_5 = arith.constant 0 : index
    %10 = vector.load %arg4[%c0_4, %c0_5] : memref<8x1xi32, #tpu.memory_space<vmem>>, vector<8x1xi32>
    %c0_6 = arith.constant 0 : index
    %c0_7 = arith.constant 0 : index
    %11 = vector.load %arg5[%c0_6, %c0_7] : memref<1x512xi32, #tpu.memory_space<vmem>>, vector<1x512xi32>
    %12 = vector.broadcast %10 : vector<8x1xi32> to vector<8x512xi32>
    %13 = vector.broadcast %11 : vector<1x512xi32> to vector<8x512xi32>
    %14 = arith.cmpi eq, %12, %13 : vector<8x512xi32>
    %c128_i32 = arith.constant 128 : i32
    %15 = vector.broadcast %c128_i32 : i32 to vector<8x512xi32>
    %16 = arith.cmpi sge, %9, %15 : vector<8x512xi32>
    %17 = arith.ori %14, %16 : vector<8x512xi1>
    %cst_8 = arith.constant -2.000000e+00 : f32
    %18 = vector.broadcast %cst_8 : f32 to vector<8x512xf32>
    %19 = arith.select %17, %18, %5 : vector<8x512xi1>, vector<8x512xf32>
    %cst_9 = arith.constant dense<0xFF800000> : vector<8xf32>
    %20 = vector.multi_reduction <maximumf>, %19, %cst_9 [1] : vector<8x512xf32> to vector<8xf32>
    %21 = vector.shape_cast %20 : vector<8xf32> to vector<8x1xf32>
    %22 = vector.broadcast %21 : vector<8x1xf32> to vector<8x512xf32>
    %23 = arith.cmpf oeq, %19, %22 : vector<8x512xf32>
    %c2147483647_i32 = arith.constant 2147483647 : i32
    %24 = vector.broadcast %c2147483647_i32 : i32 to vector<8x512xi32>
    %25 = arith.select %23, %9, %24 : vector<8x512xi1>, vector<8x512xi32>
    %cst_10 = arith.constant dense<2147483647> : vector<8xi32>
    %26 = vector.multi_reduction <minsi>, %25, %cst_10 [1] : vector<8x512xi32> to vector<8xi32>
    %27 = vector.shape_cast %26 : vector<8xi32> to vector<8x1xi32>
    %c0_11 = arith.constant 0 : index
    %c0_12 = arith.constant 0 : index
    %28 = vector.load %arg8[%c0_11, %c0_12] : memref<8x1xf32, #tpu.memory_space<vmem>>, vector<8x1xf32>
    %29 = arith.cmpf ogt, %21, %28 : vector<8x1xf32>
    %c0_13 = arith.constant 0 : index
    %c0_14 = arith.constant 0 : index
    %30 = vector.load %arg8[%c0_13, %c0_14] : memref<8x1xf32, #tpu.memory_space<vmem>>, vector<8x1xf32>
    %31 = arith.select %29, %21, %30 : vector<8x1xi1>, vector<8x1xf32>
    %c0_15 = arith.constant 0 : index
    %c0_16 = arith.constant 0 : index
    %32 = vector.load %arg8[%c0_15, %c0_16] : memref<8x1xf32, #tpu.memory_space<vmem>>, vector<8x1xf32>
    tpu.vector_store %arg8[%c0_15, %c0_16], %31 {strides = array<i32>} : memref<8x1xf32, #tpu.memory_space<vmem>>, vector<8x1xf32>,
    %c0_17 = arith.constant 0 : index
    %c0_18 = arith.constant 0 : index
    %33 = vector.load %arg6[%c0_17, %c0_18] : memref<8x1xi32, #tpu.memory_space<vmem>>, vector<8x1xi32>
    %34 = arith.select %29, %27, %33 : vector<8x1xi1>, vector<8x1xi32>
    %c0_19 = arith.constant 0 : index
    %c0_20 = arith.constant 0 : index
    %35 = vector.load %arg6[%c0_19, %c0_20] : memref<8x1xi32, #tpu.memory_space<vmem>>, vector<8x1xi32>
    tpu.vector_store %arg6[%c0_19, %c0_20], %34 {strides = array<i32>} : memref<8x1xi32, #tpu.memory_space<vmem>>, vector<8x1xi32>,
    return
  }
  func.func @transform_0(%arg0: i32, %arg1: i32) -> (i32, i32) {
    %c0_i32 = arith.constant 0 : i32
    %c0_i32_0 = arith.constant 0 : i32
    return %arg0, %c0_i32 : i32, i32
  }
  func.func @transform_1(%arg0: i32, %arg1: i32) -> (i32, i32) {
    %c0_i32 = arith.constant 0 : i32
    %c0_i32_0 = arith.constant 0 : i32
    return %arg1, %c0_i32 : i32, i32
  }
  func.func @transform_2(%arg0: i32, %arg1: i32) -> (i32, i32) {
    %c0_i32 = arith.constant 0 : i32
    %c0_i32_0 = arith.constant 0 : i32
    return %arg0, %c0_i32 : i32, i32
  }
  func.func @transform_3(%arg0: i32, %arg1: i32) -> (i32, i32) {
    %c0_i32 = arith.constant 0 : i32
    %c0_i32_0 = arith.constant 0 : i32
    return %c0_i32, %arg1 : i32, i32
  }
  func.func @transform_4(%arg0: i32, %arg1: i32) -> (i32, i32) {
    %c0_i32 = arith.constant 0 : i32
    %c0_i32_0 = arith.constant 0 : i32
    return %arg0, %c0_i32 : i32, i32
  }
}

</mosaic_0001>

<llo_original>
// kernel: tile.13
$region0: #{tile.13}
  #allocation0 [shape = 's32[1]{0}', space=sflag, size = 0x4, scoped, tag = 'scoped memory for tile.13']
  %s0 = inlined_call_operand.vmem [shape: s32[4], index: 0, kind: input, shape index: {}]
  %s1 = inlined_call_operand.vmem [shape: s32[2,4], index: 1, kind: output, shape index: {}]
  // Predicated region
  $region2: #{tile.13} parent=0 // pred_check
    _
  $region3: #{tile.13} parent=0 // pred_check_branch
    %3 = sbr.rel (0) target = $region5
  $region4: #{tile.13} parent=0 // pred_region
    _
  $region5: #{tile.13} parent=0 // pred_fallthru
    _
  %v4 = vld [vmem:[%s0] ss:$0 sm:$0xff]
  %5 = vst [vmem:[%s1] sm:$0x3] %v4

// kernel: tile.0
$region0: #{tile.0}
  %s0 = inlined_call_operand.vmem [shape: s32[2,4], index: 0, kind: input, shape index: {}]
  %s1 = inlined_call_operand.vmem [shape: s32[8,1], index: 1, kind: output, shape index: {}]
  $region1: #{tile.0} parent=0
    #allocation0 [shape = 'u8[4096]{0}', space=vmem, size = 0x1000, scoped, tag = 'scoped mem for input reshape']
    %s3 = ssub.s32 4, 1
    %v4 = vld [vmem:[%s0] sm:%s3]
    %5 = vst [vmem:[#allocation0] sm:%s3] %v4
    %v6 = vld [vmem:[#allocation0] sm:$0x3]
    %vm7 = vcmask 7168
    %8 = vst.msk [vmem:[%s1] ss:$4 sm:$0x3] %vm7, %v6
    %v9 = vld [vmem:[#allocation0] sm:$0x3]
    %10 = vrot.lane.b32.xlu0 %v9, 127
    %v11 = vpop.permute.xlu0 %10
    %vm12 = vcmask 7168
    %s13 = scalar_lea.vmem %s1, 1
    %14 = vst.msk [vmem:[%s13] ss:$4 sm:$0x3] %vm12, %v11
    %v15 = vld [vmem:[#allocation0] sm:$0x3]
    %16 = vrot.lane.b32.xlu0 %v15, 126
    %v17 = vpop.permute.xlu0 %16
    %vm18 = vcmask 7168
    %s19 = scalar_lea.vmem %s1, 2
    %20 = vst.msk [vmem:[%s19] ss:$4 sm:$0x3] %vm18, %v17
    %v21 = vld [vmem:[#allocation0] sm:$0x3]
    %22 = vrot.lane.b32.xlu0 %v21, 125
    %v23 = vpop.permute.xlu0 %22
    %vm24 = vcmask 7168
    %s25 = scalar_lea.vmem %s1, 3
    %26 = vst.msk [vmem:[%s25] ss:$4 sm:$0x3] %vm24, %v23

// kernel: nnclr_queue_forward.1
$region0: #{nnclr_queue_forward.1}
  #allocation0 [shape = 'u32[]', space=smem, size = 0x4, offset = 0x4, fixed_abs, tag = 'smem constant byte address 0x4 - core index']
  #allocation1 [shape = 'u32[72,128]{1,0:T(1,128)}', space=vmem, size = 0x9000, scoped, tag = 'internal scratch']
  #allocation2 [shape = 'bf16[8,128]{1,0:T(8,128)(2,1)}', space=vmem, size = 0x800, scoped, tag = 'scratch operand']
  #allocation3 [shape = 'f32[8,1]{1,0:T(8,128)}', space=vmem, size = 0x1000, scoped, tag = 'scratch operand']
  %s0 = inlined_call_operand.vmem [shape: f32[8,128], index: 0, kind: input, shape index: {}]
  %s1 = inlined_call_operand.hbm [shape: bf16[512,128], index: 1, kind: input, shape index: {}]
  %s2 = inlined_call_operand.vmem [shape: s32[8,1], index: 2, kind: input, shape index: {}]
  %s3 = inlined_call_operand.vmem [shape: s32[1,512], index: 3, kind: input, shape index: {}]
  %s4 = inlined_call_operand.vmem [shape: s32[8,1], index: 4, kind: output, shape index: {}]
  %s5 = sld [smem:[#allocation0]]
  $region34: #{nnclr_queue_forward.1} parent=0
    _
  %s7 = ssub.s32 1, %s5
  %s8 = scalar_select 0, %s7, %s5
  $region1: #{nnclr_queue_forward.1} parent=0
    #allocation4 [shape = 'u8[131072]{0}', space=vmem, size = 0x20000, scoped, tag = 'input window, operand 1, single buffered']
    #allocation5 [shape = 's32[1]{0}', space=sflag, size = 0x4, scoped, tag = 'scoped memory for nnclr_queue_forward.1']
    %9 = vsyncpa [#allocation5], 0
    // Predicated region
    $region2: #{nnclr_queue_forward.1} parent=1 // pred_check
      _
    $region3: #{nnclr_queue_forward.1} parent=1 // pred_check_branch
      %11 = sbr.rel (0) target = $region5
    $region4: #{nnclr_queue_forward.1} parent=1 // pred_region
      _
    $region5: #{nnclr_queue_forward.1} parent=1 // pred_fallthru
      _
    // Predicated region
    $region6: #{nnclr_queue_forward.1} parent=1 // pred_check
      _
    $region7: #{nnclr_queue_forward.1} parent=1 // pred_check_branch
      %13 = sbr.rel (0) target = $region9
    $region8: #{nnclr_queue_forward.1} parent=1 // pred_region
      %15 = vsyncadd [#allocation5], 0
      %s16 = sshll.u32 %s1, 4
      %s17 = int_to_ptr.hbm [resolvable:$true] %s16
      %s18 = sshll.u32 [#allocation4], 4
      %s19 = int_to_ptr.vmem [resolvable:$true] %s18
      %24 = dma.hbm_to_vmem [thread:$0]  %s17, 4096, %s19, [#allocation5], 64, 64, 4
    $region9: #{nnclr_queue_forward.1} parent=1 // pred_fallthru
      _
    // Predicated region
    $region10: #{nnclr_queue_forward.1} parent=1 // pred_check
      _
    $region11: #{nnclr_queue_forward.1} parent=1 // pred_check_branch
      %26 = sbr.rel (0) target = $region13
    $region12: #{nnclr_queue_forward.1} parent=1 // pred_region
      _
    $region13: #{nnclr_queue_forward.1} parent=1 // pred_fallthru
      _
    // Predicated region
    $region14: #{nnclr_queue_forward.1} parent=1 // pred_check
      _
    $region15: #{nnclr_queue_forward.1} parent=1 // pred_check_branch
      %28 = sbr.rel (0) target = $region17
    $region16: #{nnclr_queue_forward.1} parent=1 // pred_region
      _
    $region17: #{nnclr_queue_forward.1} parent=1 // pred_fallthru
      _
    // Predicated region
    $region18: #{nnclr_queue_forward.1} parent=1 // pred_check
      _
    $region19: #{nnclr_queue_forward.1} parent=1 // pred_check_branch
      %30 = sbr.rel (0) target = $region21
    $region20: #{nnclr_queue_forward.1} parent=1 // pred_region
      %32 = dma.done [#allocation5], 4096
    $region21: #{nnclr_queue_forward.1} parent=1 // pred_fallthru
      _
    %p33 = scmp.eq.s32.totalorder 0, 0
    // Predicated region
    $region22: #{nnclr_queue_forward.1} parent=1 // pred_check
      %p34 = pneg %p33
    $region23: #{nnclr_queue_forward.1} parent=1 // pred_check_branch
      %36 = sbr.rel (%p34) target = $region25
    $region24: #{nnclr_queue_forward.1} parent=1 // pred_region
      %v37 = vld [vmem:[%s0] sm:$0xff]
      %v38 = vmul.f32 %v37, %v37
      %39 = vadd.xlane.f32.xlu0 %v38
      %v40 = vpop.xlane.xlu0 %39
      %v41 = vmax.f32 %v40, 1e-24
      %v42 = vrsqrt.pop %v41
      %v43 = vmul.f32 %v42, %v41
      %v44 = vmul.f32 %v43, %v42
      %v45 = vmul.f32 0.5, %v44
      %v46 = vsub.f32 1.5, %v45
      %v47 = vmul.f32 %v42, %v46
      %vm48 = vweird.f32 %v41
      %vm49 = vweird.f32 %v42
      %vm50 = vmor %vm48, %vm49
      %v51 = vsel %vm50, %v42, %v47
      %v52 = vmul.f32 %v37, %v51
      %v53 = vpack.c.bf16 %v52, %v52
      %54 = vst [vmem:[#allocation2] sm:$0xf] %v53
      %vm55 = vcmask 7168
      %56 = vst.msk [vmem:[#allocation3] sm:$0xff] %vm55, -4.0
      %57 = vst.msk [vmem:[%s4] sm:$0xff] %vm55, 0
    $region25: #{nnclr_queue_forward.1} parent=1 // pred_fallthru
      _
    %v58 = vld [vmem:[#allocation2] sm:$0xf]
    %v59 = vld [vmem:[#allocation4] sm:$0xf]
    %v60 = vld [vmem:[#allocation4 + $0x4] sm:$0xf]
    %v61 = vld [vmem:[#allocation4 + $0x8] sm:$0xf]
    %v62 = vld [vmem:[#allocation4 + $0xc] sm:$0xf]
    %v63 = vld [vmem:[#allocation4 + $0x10] sm:$0xf]
    %v64 = vld [vmem:[#allocation4 + $0x14] sm:$0xf]
    %v65 = vld [vmem:[#allocation4 + $0x18] sm:$0xf]
    %v66 = vld [vmem:[#allocation4 + $0x1c] sm:$0xf]
    %v67 = vld [vmem:[#allocation4 + $0x20] sm:$0xf]
    %v68 = vld [vmem:[#allocation4 + $0x24] sm:$0xf]
    %v69 = vld [vmem:[#allocation4 + $0x28] sm:$0xf]
    %v70 = vld [vmem:[#allocation4 + $0x2c] sm:$0xf]
    %v71 = vld [vmem:[#allocation4 + $0x30] sm:$0xf]
    %v72 = vld [vmem:[#allocation4 + $0x34] sm:$0xf]
    %v73 = vld [vmem:[#allocation4 + $0x38] sm:$0xf]
    %v74 = vld [vmem:[#allocation4 + $0x3c] sm:$0xf]
    %v75 = vld [vmem:[#allocation4 + $0x40] sm:$0xf]
    %v76 = vld [vmem:[#allocation4 + $0x44] sm:$0xf]
    %v77 = vld [vmem:[#allocation4 + $0x48] sm:$0xf]
    %v78 = vld [vmem:[#allocation4 + $0x4c] sm:$0xf]
    %v79 = vld [vmem:[#allocation4 + $0x50] sm:$0xf]
    %v80 = vld [vmem:[#allocation4 + $0x54] sm:$0xf]
    %v81 = vld [vmem:[#allocation4 + $0x58] sm:$0xf]
    %v82 = vld [vmem:[#allocation4 + $0x5c] sm:$0xf]
    %v83 = vld [vmem:[#allocation4 + $0x60] sm:$0xf]
    %v84 = vld [vmem:[#allocation4 + $0x64] sm:$0xf]
    %v85 = vld [vmem:[#allocation4 + $0x68] sm:$0xf]
    %v86 = vld [vmem:[#allocation4 + $0x6c] sm:$0xf]
    %v87 = vld [vmem:[#allocation4 + $0x70] sm:$0xf]
    %v88 = vld [vmem:[#allocation4 + $0x74] sm:$0xf]
    %v89 = vld [vmem:[#allocation4 + $0x78] sm:$0xf]
    %v90 = vld [vmem:[#allocation4 + $0x7c] sm:$0xf]
    %v91 = vld [vmem:[#allocation4 + $0x80] sm:$0xf]
    %v92 = vld [vmem:[#allocation4 + $0x84] sm:$0xf]
    %v93 = vld [vmem:[#allocation4 + $0x88] sm:$0xf]
    %v94 = vld [vmem:[#allocation4 + $0x8c] sm:$0xf]
    %v95 = vld [vmem:[#allocation4 + $0x90] sm:$0xf]
    %v96 = vld [vmem:[#allocation4 + $0x94] sm:$0xf]
    %v97 = vld [vmem:[#allocation4 + $0x98] sm:$0xf]
    %v98 = vld [vmem:[#allocation4 + $0x9c] sm:$0xf]
    %v99 = vld [vmem:[#allocation4 + $0xa0] sm:$0xf]
    %v100 = vld [vmem:[#allocation4 + $0xa4] sm:$0xf]
    %v101 = vld [vmem:[#allocation4 + $0xa8] sm:$0xf]
    %v102 = vld [vmem:[#allocation4 + $0xac] sm:$0xf]
    %v103 = vld [vmem:[#allocation4 + $0xb0] sm:$0xf]
    %v104 = vld [vmem:[#allocation4 + $0xb4] sm:$0xf]
    %v105 = vld [vmem:[#allocation4 + $0xb8] sm:$0xf]
    %v106 = vld [vmem:[#allocation4 + $0xbc] sm:$0xf]
    %v107 = vld [vmem:[#allocation4 + $0xc0] sm:$0xf]
    %v108 = vld [vmem:[#allocation4 + $0xc4] sm:$0xf]
    %v109 = vld [vmem:[#allocation4 + $0xc8] sm:$0xf]
    %v110 = vld [vmem:[#allocation4 + $0xcc] sm:$0xf]
    %v111 = vld [vmem:[#allocation4 + $0xd0] sm:$0xf]
    %v112 = vld [vmem:[#allocation4 + $0xd4] sm:$0xf]
    %v113 = vld [vmem:[#allocation4 + $0xd8] sm:$0xf]
    %v114 = vld [vmem:[#allocation4 + $0xdc] sm:$0xf]
    %v115 = vld [vmem:[#allocation4 + $0xe0] sm:$0xf]
    %v116 = vld [vmem:[#allocation4 + $0xe4] sm:$0xf]
    %v117 = vld [vmem:[#allocation4 + $0xe8] sm:$0xf]
    %v118 = vld [vmem:[#allocation4 + $0xec] sm:$0xf]
    %v119 = vld [vmem:[#allocation4 + $0xf0] sm:$0xf]
    %v120 = vld [vmem:[#allocation4 + $0xf4] sm:$0xf]
    %v121 = vld [vmem:[#allocation4 + $0xf8] sm:$0xf]
    %v122 = vld [vmem:[#allocation4 + $0xfc] sm:$0xf]
    %v187 = vunpack.c.l.b16 %v59
    %v188 = vunpack.c.l.b16 %v60
    %v189 = vunpack.c.l.b16 %v61
    %v190 = vunpack.c.l.b16 %v62
    %v191 = vunpack.c.l.b16 %v63
    %v192 = vunpack.c.l.b16 %v64
    %v193 = vunpack.c.l.b16 %v65
    %v194 = vunpack.c.l.b16 %v66
    %v195 = vunpack.c.l.b16 %v67
    %v196 = vunpack.c.l.b16 %v68
    %v197 = vunpack.c.l.b16 %v69
    %v198 = vunpack.c.l.b16 %v70
    %v199 = vunpack.c.l.b16 %v71
    %v200 = vunpack.c.l.b16 %v72
    %v201 = vunpack.c.l.b16 %v73
    %v202 = vunpack.c.l.b16 %v74
    %v203 = vunpack.c.l.b16 %v75
    %v204 = vunpack.c.l.b16 %v76
    %v205 = vunpack.c.l.b16 %v77
    %v206 = vunpack.c.l.b16 %v78
    %v207 = vunpack.c.l.b16 %v79
    %v208 = vunpack.c.l.b16 %v80
    %v209 = vunpack.c.l.b16 %v81
    %v210 = vunpack.c.l.b16 %v82
    %v211 = vunpack.c.l.b16 %v83
    %v212 = vunpack.c.l.b16 %v84
    %v213 = vunpack.c.l.b16 %v85
    %v214 = vunpack.c.l.b16 %v86
    %v215 = vunpack.c.l.b16 %v87
    %v216 = vunpack.c.l.b16 %v88
    %v217 = vunpack.c.l.b16 %v89
    %v218 = vunpack.c.l.b16 %v90
    %v219 = vunpack.c.l.b16 %v91
    %v220 = vunpack.c.l.b16 %v92
    %v221 = vunpack.c.l.b16 %v93
    %v222 = vunpack.c.l.b16 %v94
    %v223 = vunpack.c.l.b16 %v95
    %v224 = vunpack.c.l.b16 %v96
    %v225 = vunpack.c.l.b16 %v97
    %v226 = vunpack.c.l.b16 %v98
    %v227 = vunpack.c.l.b16 %v99
    %v228 = vunpack.c.l.b16 %v100
    %v229 = vunpack.c.l.b16 %v101
    %v230 = vunpack.c.l.b16 %v102
    %v231 = vunpack.c.l.b16 %v103
    %v232 = vunpack.c.l.b16 %v104
    %v233 = vunpack.c.l.b16 %v105
    %v234 = vunpack.c.l.b16 %v106
    %v235 = vunpack.c.l.b16 %v107
    %v236 = vunpack.c.l.b16 %v108
    %v237 = vunpack.c.l.b16 %v109
    %v238 = vunpack.c.l.b16 %v110
    %v239 = vunpack.c.l.b16 %v111
    %v240 = vunpack.c.l.b16 %v112
    %v241 = vunpack.c.l.b16 %v113
    %v242 = vunpack.c.l.b16 %v114
    %v243 = vunpack.c.l.b16 %v115
    %v244 = vunpack.c.l.b16 %v116
    %v245 = vunpack.c.l.b16 %v117
    %v246 = vunpack.c.l.b16 %v118
    %v247 = vunpack.c.l.b16 %v119
    %v248 = vunpack.c.l.b16 %v120
    %v249 = vunpack.c.l.b16 %v121
    %v250 = vunpack.c.l.b16 %v122
    %v251 = vpack.c.b16 %v188, %v187
    %v252 = vpack.c.b16 %v190, %v189
    %v253 = vpack.c.b16 %v192, %v191
    %v254 = vpack.c.b16 %v194, %v193
    %v255 = vpack.c.b16 %v196, %v195
    %v256 = vpack.c.b16 %v198, %v197
    %v257 = vpack.c.b16 %v200, %v199
    %v258 = vpack.c.b16 %v202, %v201
    %v259 = vpack.c.b16 %v204, %v203
    %v260 = vpack.c.b16 %v206, %v205
    %v261 = vpack.c.b16 %v208, %v207
    %v262 = vpack.c.b16 %v210, %v209
    %v263 = vpack.c.b16 %v212, %v211
    %v264 = vpack.c.b16 %v214, %v213
    %v265 = vpack.c.b16 %v216, %v215
    %v266 = vpack.c.b16 %v218, %v217
    %v267 = vpack.c.b16 %v220, %v219
    %v268 = vpack.c.b16 %v222, %v221
    %v269 = vpack.c.b16 %v224, %v223
    %v270 = vpack.c.b16 %v226, %v225
    %v271 = vpack.c.b16 %v228, %v227
    %v272 = vpack.c.b16 %v230, %v229
    %v273 = vpack.c.b16 %v232, %v231
    %v274 = vpack.c.b16 %v234, %v233
    %v275 = vpack.c.b16 %v236, %v235
    %v276 = vpack.c.b16 %v238, %v237
    %v277 = vpack.c.b16 %v240, %v239
    %v278 = vpack.c.b16 %v242, %v241
    %v279 = vpack.c.b16 %v244, %v243
    %v280 = vpack.c.b16 %v246, %v245
    %v281 = vpack.c.b16 %v248, %v247
    %v282 = vpack.c.b16 %v250, %v249
    %315 = vmatpush.bf16.xpose.msra.mxu0 %v258
    %316 = vmatpush.bf16.xpose.msra.mxu0 %v257
    %317 = vmatpush.bf16.xpose.msra.mxu0 %v256
    %318 = vmatpush.bf16.xpose.msra.mxu0 %v255
    %319 = vmatpush.bf16.xpose.msra.mxu0 %v254
    %320 = vmatpush.bf16.xpose.msra.mxu0 %v253
    %321 = vmatpush.bf16.xpose.msra.mxu0 %v252
    %322 = vmatpush.bf16.xpose.msra.mxu0 %v251
    %323 = vmatmul.bf16.gmra.mxu0 %v58
    %v324 = vpop.f32.mrf.mxu0
    %v325 = vadd.f32 0.0, %v324
    %v326 = vpop.f32.mrf.mxu0
    %327 = vdwg.mxu0
    %328 = vmatpush.bf16.xpose.msra.mxu0 %v266
    %329 = vmatpush.bf16.xpose.msra.mxu0 %v265
    %330 = vmatpush.bf16.xpose.msra.mxu0 %v264
    %331 = vmatpush.bf16.xpose.msra.mxu0 %v263
    %332 = vmatpush.bf16.xpose.msra.mxu0 %v262
    %333 = vmatpush.bf16.xpose.msra.mxu0 %v261
    %334 = vmatpush.bf16.xpose.msra.mxu0 %v260
    %335 = vmatpush.bf16.xpose.msra.mxu0 %v259
    %336 = vmatmul.bf16.gmra.mxu0 %v58
    %v337 = vpop.f32.mrf.mxu0
    %v338 = vadd.f32 0.0, %v337
    %v339 = vpop.f32.mrf.mxu0
    %340 = vdwg.mxu0
    %341 = vmatpush.bf16.xpose.msra.mxu0 %v274
    %342 = vmatpush.bf16.xpose.msra.mxu0 %v273
    %343 = vmatpush.bf16.xpose.msra.mxu0 %v272
    %344 = vmatpush.bf16.xpose.msra.mxu0 %v271
    %345 = vmatpush.bf16.xpose.msra.mxu0 %v270
    %346 = vmatpush.bf16.xpose.msra.mxu0 %v269
    %347 = vmatpush.bf16.xpose.msra.mxu0 %v268
    %348 = vmatpush.bf16.xpose.msra.mxu0 %v267
    %349 = vmatmul.bf16.gmra.mxu0 %v58
    %v350 = vpop.f32.mrf.mxu0
    %v351 = vadd.f32 0.0, %v350
    %v352 = vpop.f32.mrf.mxu0
    %353 = vdwg.mxu0
    %354 = vmatpush.bf16.xpose.msra.mxu0 %v282
    %355 = vmatpush.bf16.xpose.msra.mxu0 %v281
    %356 = vmatpush.bf16.xpose.msra.mxu0 %v280
    %357 = vmatpush.bf16.xpose.msra.mxu0 %v279
    %358 = vmatpush.bf16.xpose.msra.mxu0 %v278
    %359 = vmatpush.bf16.xpose.msra.mxu0 %v277
    %360 = vmatpush.bf16.xpose.msra.mxu0 %v276
    %361 = vmatpush.bf16.xpose.msra.mxu0 %v275
    %362 = vmatmul.bf16.gmra.mxu0 %v58
    %v363 = vpop.f32.mrf.mxu0
    %v364 = vadd.f32 0.0, %v363
    %v365 = vpop.f32.mrf.mxu0
    %366 = vdwg.mxu0
    %v367 = vlaneseq
    %v368 = vand.u32 %v367, 127
    %v369 = vadd.s32 %v368, 128
    %v370 = vadd.s32 %v368, 256
    %v371 = vadd.s32 %v368, 384
    %s372 = smul.u32 0, 512
    %v373 = vstv %s372
    %v374 = vadd.s32 %v368, %v373
    %v375 = vadd.s32 %v369, %v373
    %v376 = vadd.s32 %v370, %v373
    %v377 = vadd.s32 %v371, %v373
    %v378 = vld [vmem:[%s2] sm:$0xff]
    %v379 = vld [vmem:[%s3] sm:$0xf]
    %380 = vset.pattern.permute.xlu0 0
    %381 = vperm.xlu0 %380, %v378
    %v382 = vpop.permute.xlu0 %381
    %v383 = vperm.slane %v379, 0
    %v384 = vperm.slane %v379, 1
    %v385 = vperm.slane %v379, 2
    %v386 = vperm.slane %v379, 3
    %vm387 = vcmp.eq.s32.totalorder %v382, %v383
    %vm388 = vcmp.eq.s32.totalorder %v382, %v384
    %vm389 = vcmp.eq.s32.totalorder %v382, %v385
    %vm390 = vcmp.eq.s32.totalorder %v382, %v386
    %vm391 = vcmp.ge.s32.totalorder %v374, 128
    %vm392 = vcmp.ge.s32.totalorder %v375, 128
    %vm393 = vcmp.ge.s32.totalorder %v376, 128
    %vm394 = vcmp.ge.s32.totalorder %v377, 128
    %vm395 = vmor %vm387, %vm391
    %vm396 = vmor %vm388, %vm392
    %vm397 = vmor %vm389, %vm393
    %vm398 = vmor %vm390, %vm394
    %v399 = vsel %vm395, -2.0, %v325
    %v400 = vsel %vm396, -2.0, %v338
    %v401 = vsel %vm397, -2.0, %v351
    %v402 = vsel %vm398, -2.0, %v364
    %v403 = vmax.f32 %v399, %v400
    %v404 = vmax.f32 %v401, %v402
    %v405 = vmax.f32 %v403, %v404
    %406 = vmax.xlane.f32.xlu0 %v405
    %v407 = vpop.xlane.xlu0 %406
    %vm408 = vcmp.eq.f32.partialorder %v399, %v407
    %vm409 = vcmp.eq.f32.partialorder %v400, %v407
    %vm410 = vcmp.eq.f32.partialorder %v401, %v407
    %vm411 = vcmp.eq.f32.partialorder %v402, %v407
    %v412 = vsel %vm408, %v374, 2147483647
    %v413 = vsel %vm409, %v375, 2147483647
    %v414 = vsel %vm410, %v376, 2147483647
    %v415 = vsel %vm411, %v377, 2147483647
    %vm416 = vcmp.lt.s32.totalorder %v412, %v413
    %v417 = vsel %vm416, %v412, %v413
    %vm418 = vcmp.lt.s32.totalorder %v414, %v415
    %v419 = vsel %vm418, %v414, %v415
    %vm420 = vcmp.lt.s32.totalorder %v417, %v419
    %v421 = vsel %vm420, %v417, %v419
    %v422 = vand.u32 %v421, 65535
    %v423 = vshra.s32 %v421, 16
    %v424 = vcvt.s32.f32 %v422
    %v425 = vcvt.s32.f32 %v423
    %426 = vmin.xlane.f32.xlu0 %v425
    %v427 = vpop.xlane.xlu0 %426
    %vm428 = vcmp.eq.f32.partialorder %v425, %v427
    %v429 = vsel %vm428, %v424, inf
    %430 = vmin.xlane.f32.xlu0 %v429
    %v431 = vpop.xlane.xlu0 %430
    %v432 = vcvt.f32.s32 %v431
    %v433 = vcvt.f32.s32 %v427
    %v434 = vshll.u32 %v433, 16
    %v435 = vadd.s32 %v434, %v432
    %v436 = vld [vmem:[#allocation3] sm:$0xff]
    %vm437 = vcmp.gt.f32.partialorder %v407, %v436
    %v438 = vsel %vm437, %v407, %v436
    %vm439 = vcmask 7168
    %440 = vst.msk [vmem:[#allocation3] sm:$0xff] %vm439, %v438
    %v441 = vld [vmem:[%s4] sm:$0xff]
    %v442 = vsel %vm437, %v435, %v441
    %443 = vst.msk [vmem:[%s4] sm:$0xff] %vm439, %v442
    // Predicated region
    $region26: #{nnclr_queue_forward.1} parent=1 // pred_check
      _
    $region27: #{nnclr_queue_forward.1} parent=1 // pred_check_branch
      %445 = sbr.rel (0) target = $region29
    $region28: #{nnclr_queue_forward.1} parent=1 // pred_region
      _
    $region29: #{nnclr_queue_forward.1} parent=1 // pred_fallthru
      _
    // Predicated region
    $region30: #{nnclr_queue_forward.1} parent=1 // pred_check
      _
    $region31: #{nnclr_queue_forward.1} parent=1 // pred_check_branch
      %447 = sbr.rel (0) target = $region33
    $region32: #{nnclr_queue_forward.1} parent=1 // pred_region
      _
    $region33: #{nnclr_queue_forward.1} parent=1 // pred_fallthru
      _
    %448 = vsyncpa [#allocation5], 1

</llo_original>
